<compile_context>
chip_gen: v7x
topology: tpu7x:2x2x1
jax: 0.10.0
libtpu: 0.0.40
codegen_flags: <defaults>
</compile_context>

<pallas_src>
import math

import jax
import jax.numpy as jnp
from jax.experimental import pallas as pl
from jax.experimental.pallas import tpu as pltpu


def _bias_kernel(b_ref, o_ref):
    # Pure output writeback: broadcast the resident (1, tile_f) bias tile.
    o_ref[...] = jnp.broadcast_to(b_ref[...], o_ref.shape)


def _sublane(dtype):
    return {4: 8, 2: 16, 1: 32}.get(jnp.dtype(dtype).itemsize, 8)


def _round_up(x, m):
    return ((x + m - 1) // m) * m


def bias_layer(x, bias, *, per_buffer_budget_bytes=6 * 1024 * 1024):
    """Pallas implementation of BiasLayer.forward: zeros_like(x) + bias."""
    orig_shape = x.shape
    F = bias.shape[0]
    assert orig_shape[-1] == F, "last dim of x must equal num_features"

    out_dtype = jnp.promote_types(x.dtype, bias.dtype)
    itemsize = jnp.dtype(out_dtype).itemsize
    sublane = _sublane(out_dtype)

    N = 1
    for d in orig_shape[:-1]:
        N *= d
    total = N * F
    if total == 0:
        return jnp.zeros(orig_shape, out_dtype)

    # ---- lane-dense output layout ---------------------------------------
    # If F % 128 != 0 the stores lower to masked vst.msk + strided HBM DMA.
    # The output is just `bias` repeated total/F times, so re-block the flat
    # output into rows of width L = lcm(F, 128) whenever total % L == 0.
    if F % 128 == 0:
        rows, width = N, F
        bias_row = bias.astype(out_dtype).reshape(1, F)
    else:
        L = (F * 128) // math.gcd(F, 128)  # lcm(F, 128)
        if total % L == 0:
            rows, width = total // L, L
            bias_row = jnp.tile(bias.astype(out_dtype), L // F).reshape(1, L)
        else:
            rows, width = N, F  # fall back to masked stores
            bias_row = bias.astype(out_dtype).reshape(1, F)

    # ---- feature tiling for very wide rows -------------------------------
    # A sublane-floor tile is sublane*width*itemsize bytes; if that alone
    # exceeds the per-buffer budget, tile the feature axis in 128-multiples.
    min_tile_bytes = sublane * width * itemsize
    if width % 128 == 0 and min_tile_bytes > per_buffer_budget_bytes:
        tile_f = (per_buffer_budget_bytes // (sublane * itemsize)) // 128 * 128
        tile_f = min(width, max(128, tile_f))
    else:
        tile_f = width
    feat_blocks = pl.cdiv(width, tile_f)

    # ---- row tiling: as big as the VMEM budget allows, but keep >= 2 blocks
    # so v7x's two TensorCores both get writeback work.
    rows_in_budget = max(
        sublane, per_buffer_budget_bytes // max(1, tile_f * itemsize))
    rows_in_budget = max(sublane, (rows_in_budget // sublane) * sublane)
    if rows <= sublane:
        tile_rows = rows
    else:
        half_rows = _round_up(pl.cdiv(rows, 2), sublane)
        tile_rows = min(rows_in_budget, half_rows)
    row_blocks = pl.cdiv(rows, tile_rows)

    out = pl.pallas_call(
        _bias_kernel,
        out_shape=jax.ShapeDtypeStruct((rows, width), out_dtype),
        grid=(row_blocks, feat_blocks),
        in_specs=[
            # bias tile: block index constant along rows -> VMEM-resident.
            pl.BlockSpec((1, tile_f), lambda i, j: (0, j)),
        ],
        out_specs=pl.BlockSpec((tile_rows, tile_f), lambda i, j: (i, j)),
        compiler_params=pltpu.CompilerParams(
            dimension_semantics=("parallel", "parallel"),
        ),
        cost_estimate=pl.CostEstimate(
            flops=0,
            transcendentals=0,
            bytes_accessed=total * itemsize,
        ),
    )(bias_row)

    return out.reshape(orig_shape)


if __name__ == "__main__":
    key = jax.random.PRNGKey(0)

    # Shapes consistent with the module: num_features = 128, batch = 16.
    num_features = 128
    batch = 16
    offset = 0.5  # deterministic parameter init: bias = offset * ones(F)

    x = jax.random.normal(key, (batch, num_features), dtype=jnp.float32)
    bias = offset * jnp.ones((num_features,), dtype=jnp.float32)

    y = bias_layer(x, bias)
    jax.block_until_ready(y)

    y_ref = jnp.zeros_like(x) + bias
    assert y.shape == x.shape
    assert y.dtype == y_ref.dtype
    assert jnp.allclose(y, y_ref), "mismatch vs reference (F=128 path)"

    # Second check exercising the lane-dense re-blocking path (F % 128 != 0).
    k2 = jax.random.PRNGKey(0)
    num_features2 = 96
    x2 = jax.random.normal(k2, (4, 8, num_features2), dtype=jnp.float32)
    bias2 = jax.random.normal(jax.random.PRNGKey(1), (num_features2,),
                              dtype=jnp.float32)
    y2 = bias_layer(x2, bias2)
    jax.block_until_ready(y2)
    y2_ref = jnp.zeros_like(x2) + bias2
    assert y2.shape == x2.shape
    assert jnp.allclose(y2, y2_ref), "mismatch vs reference (lane-dense path)"

    print("KERNEL_OK")
</pallas_src>

<mosaic_0001>
module attributes {stable_mosaic.version = 11 : i64} {
  func.func @_bias_kernel(%arg0: i32, %arg1: i32, %arg2: memref<1x128xf32, #tpu.memory_space<vmem>>, %arg3: memref<8x128xf32, #tpu.memory_space<vmem>>) attributes {dimension_semantics = [#tpu.dimension_semantics<parallel>, #tpu.dimension_semantics<parallel>], iteration_bounds = array<i64: 2, 1>, scalar_prefetch = 0 : i64, scratch_operands = 0 : i64, tpu.core_type = #tpu.core_type<tc>, window_params = [{transform_indices = @transform_0, window_bounds = array<i64: 1, 128>}, {transform_indices = @transform_1, window_bounds = array<i64: 8, 128>}]} {
    %c0 = arith.constant 0 : index
    %c0_0 = arith.constant 0 : index
    %0 = vector.load %arg2[%c0, %c0_0] : memref<1x128xf32, #tpu.memory_space<vmem>>, vector<1x128xf32>
    %1 = vector.shape_cast %0 : vector<1x128xf32> to vector<1x128xf32>
    %2 = vector.broadcast %1 : vector<1x128xf32> to vector<8x128xf32>
    %c0_1 = arith.constant 0 : index
    %c0_2 = arith.constant 0 : index
    %3 = vector.load %arg3[%c0_1, %c0_2] : memref<8x128xf32, #tpu.memory_space<vmem>>, vector<8x128xf32>
    tpu.vector_store %arg3[%c0_1, %c0_2], %2 {strides = array<i32>} : memref<8x128xf32, #tpu.memory_space<vmem>>, vector<8x128xf32>,
    return
  }
  func.func @transform_0(%arg0: i32, %arg1: i32) -> (i32, i32) {
    %c0_i32 = arith.constant 0 : i32
    %c0_i32_0 = arith.constant 0 : i32
    return %c0_i32, %arg1 : i32, i32
  }
  func.func @transform_1(%arg0: i32, %arg1: i32) -> (i32, i32) {
    %c0_i32 = arith.constant 0 : i32
    return %arg0, %arg1 : i32, i32
  }
}

</mosaic_0001>

<llo_original>
// kernel: tpu_custom_call.1
$region0: #{tpu_custom_call.1}
  #allocation0 [shape = 'u32[]', space=smem, size = 0x4, offset = 0x4, fixed_abs, tag = 'smem constant byte address 0x4 - core index']
  #allocation1 [shape = 'u32[144,128]{1,0:T(1,128)}', space=vmem, size = 0x12000, scoped, tag = 'internal scratch']
  %s0 = inlined_call_operand.hbm [shape: f32[1,128], index: 0, kind: input, shape index: {}]
  %s1 = inlined_call_operand.hbm [shape: f32[16,128], index: 1, kind: output, shape index: {}]
  %s2 = sld [smem:[#allocation0]]
  $region41: #{tpu_custom_call.1} parent=0
    _
  %s4 = ssub.s32 1, %s2
  %s5 = scalar_select 0, %s4, %s2
  $region1: #{tpu_custom_call.1} parent=0
    #allocation2 [shape = 'u8[512]{0}', space=vmem, size = 0x400, scoped, tag = 'input window, operand 0, single buffered']
    #allocation3 [shape = 's32[2]{0}', space=sflag, size = 0x8, scoped, tag = 'scoped memory for tpu_custom_call.1']
    #allocation4 [shape = 's32[2]{0}', space=sflag, size = 0x8, scoped, tag = 'scoped memory for tpu_custom_call.1']
    #allocation5 [shape = 'u8[8192]{0}', space=vmem, size = 0x2000, scoped, tag = 'output window, operand 0']
    %6 = vsyncpa [#allocation3], 0
    %7 = vsyncpa [#allocation4], 0
    %s8 = scalar_lea.sflag [#allocation4], 1
    %9 = vsyncpa %s8, 0
    loop: start=0, step=1, limit=4
    $region2: #{tpu_custom_call.1} parent=1 // loop_pre_header
      _
    $region3: #{tpu_custom_call.1} parent=1 // loop_header
      %s11 = sphi 0, %s15
      %p12 = scmp.ge.s32.totalorder %s11, 4
      %s18 = sphi 0, %s30
      %s19 = sphi 0, %s26
      %s20 = sphi 0, %s18
      %s21 = sphi 0, %s19
      %s22 = sphi 0, %s20
      %s23 = sphi 0, %s21
      %s33 = sphi 0, %s35
      %s36 = sphi 0, %s33
      %s37 = sphi 0, %s36
      %s53 = sphi 0, %s37
      %s61 = sphi 0, %s63
      %s64 = sphi 0, %s61
      %s65 = sphi 0, %s64
      %s81 = sphi 0, %s65
    $region4: #{tpu_custom_call.1} parent=1 // loop_header_branch
      %14 = sbr.rel (%p12) target = $region8
    $region5: #{tpu_custom_call.1} parent=1 // loop_body
      %s16 = ssub.s32 %s11, 1
      %s17 = ssub.s32 %s11, 2
      %s24 = sadd.s32 1, %s19
      %p25 = scmp.ge.s32.totalorder %s24, 1
      %s26 = scalar_select %p25, 0, %s24
      %s27 = sadd.s32 1, %s18
      %s28 = scalar_select %p25, %s27, %s18
      %p29 = scmp.ge.s32.totalorder %s28, 2
      %s30 = scalar_select %p29, 0, %s28
      %s31 = ssub.s32 %s19, %s26
      %p32 = scmp.eq.s32.totalorder %s31, 0
      %s34 = sadd.s32 %s33, 1
      %s35 = scalar_select %p32, %s33, %s34
      %p38 = pneg %p32
      %p39 = scmp.eq.s32.totalorder %s11, 1
      %p40 = por %p38, %p39
      %p41 = scmp.ne.s32.totalorder %s33, %s36
      %p42 = scmp.eq.s32.totalorder %s11, 0
      %p43 = por %p41, %p42
      %p44 = scmp.ne.s32.totalorder %s33, %s36
      %p45 = scmp.eq.s32.totalorder %s16, 1
      %p46 = por %p44, %p45
      %p47 = scmp.ne.s32.totalorder %s36, %s37
      %p48 = scmp.eq.s32.totalorder %s16, 0
      %p49 = por %p47, %p48
      %p50 = scmp.ne.s32.totalorder %s36, %s37
      %p51 = scmp.eq.s32.totalorder %s17, 1
      %p52 = por %p50, %p51
      %p54 = scmp.ne.s32.totalorder %s37, %s53
      %p55 = scmp.eq.s32.totalorder %s17, 0
      %p56 = por %p54, %p55
      %s57 = ssub.s32 %s18, %s30
      %s58 = ssub.s32 %s19, %s26
      %s59 = sor.u32 %s57, %s58
      %p60 = scmp.eq.s32.totalorder %s59, 0
      %s62 = sadd.s32 %s61, 1
      %s63 = scalar_select %p60, %s61, %s62
      %p66 = pneg %p60
      %p67 = scmp.eq.s32.totalorder %s11, 1
      %p68 = por %p66, %p67
      %p69 = scmp.ne.s32.totalorder %s61, %s64
      %p70 = scmp.eq.s32.totalorder %s11, 0
      %p71 = por %p69, %p70
      %p72 = scmp.ne.s32.totalorder %s61, %s64
      %p73 = scmp.eq.s32.totalorder %s16, 1
      %p74 = por %p72, %p73
      %p75 = scmp.ne.s32.totalorder %s64, %s65
      %p76 = scmp.eq.s32.totalorder %s16, 0
      %p77 = por %p75, %p76
      %p78 = scmp.ne.s32.totalorder %s64, %s65
      %p79 = scmp.eq.s32.totalorder %s17, 1
      %p80 = por %p78, %p79
      %p82 = scmp.ne.s32.totalorder %s65, %s81
      %p83 = scmp.eq.s32.totalorder %s17, 0
      %p84 = por %p82, %p83
      %p85 = scmp.le.s32.totalorder 1, %s11
      %p86 = scmp.lt.s32.totalorder %s11, 3
      %p87 = pnand %p85, %p86
      %p88 = pneg %p87
      // Predicated region
      $region9: #{tpu_custom_call.1} parent=5 // pred_check
        _
      $region10: #{tpu_custom_call.1} parent=5 // pred_check_branch
        %90 = sbr.rel (%p87) target = $region12
      $region11: #{tpu_custom_call.1} parent=5 // pred_region
        %s91 = ssub.s32 %s11, 1
        // Predicated region
        $region13: #{tpu_custom_call.1} parent=11 // pred_check
          %p92 = pneg %p49
        $region14: #{tpu_custom_call.1} parent=11 // pred_check_branch
          %94 = sbr.rel (%p92) target = $region16
        $region15: #{tpu_custom_call.1} parent=11 // pred_region
          %s96 = ssub.s32 16, 16
          %97 = vsyncadd [#allocation3], %s96
          %s98 = smul.addr %s21, 16
          %s99 = scalar_lea.hbm %s0, %s98
          %s101 = sshll.u32 [#allocation2], 4
          %s102 = int_to_ptr.vmem [resolvable:$true] %s101
          %104 = dma.hbm_to_vmem [thread:$0]  %s99, 16, %s102, [#allocation3]
        $region16: #{tpu_custom_call.1} parent=11 // pred_fallthru
          _
      $region12: #{tpu_custom_call.1} parent=5 // pred_fallthru
        _
      %p105 = scmp.lt.s32.totalorder %s11, 2
      // Predicated region
      $region17: #{tpu_custom_call.1} parent=5 // pred_check
        %p106 = pneg %p105
      $region18: #{tpu_custom_call.1} parent=5 // pred_check_branch
        %108 = sbr.rel (%p106) target = $region20
      $region19: #{tpu_custom_call.1} parent=5 // pred_region
        _
      $region20: #{tpu_custom_call.1} parent=5 // pred_fallthru
        _
      %p109 = scmp.le.s32.totalorder 1, %s11
      %p110 = scmp.lt.s32.totalorder %s11, 3
      %p111 = pnand %p109, %p110
      %p112 = pneg %p111
      // Predicated region
      $region21: #{tpu_custom_call.1} parent=5 // pred_check
        _
      $region22: #{tpu_custom_call.1} parent=5 // pred_check_branch
        %114 = sbr.rel (%p111) target = $region24
      $region23: #{tpu_custom_call.1} parent=5 // pred_region
        %s115 = ssub.s32 %s11, 1
        // Predicated region
        $region25: #{tpu_custom_call.1} parent=23 // pred_check
          %p116 = pneg %p49
        $region26: #{tpu_custom_call.1} parent=23 // pred_check_branch
          %118 = sbr.rel (%p116) target = $region28
        $region27: #{tpu_custom_call.1} parent=23 // pred_region
          %119 = dma.done [#allocation3], 16
        $region28: #{tpu_custom_call.1} parent=23 // pred_fallthru
          _
        %p120 = pneg %p49
        %p121 = pneg %p46
        %p122 = pneg %p77
        %p123 = pneg %p74
        %s124 = sand.u32 %s64, 1
        %s125 = scalar_lea.sflag [#allocation4], %s124
        %s126 = sand.u32 %s64, 1
        %s127 = smul.addr %s126, 8
        %s128 = scalar_lea.vmem [#allocation5], %s127
        %v129 = vld [vmem:[#allocation2] sm:$0x1]
        %v131 = vlaneseq
        %v132 = vshrl.u32 %v131, 7
        %v133 = vsub.s32 0, %v132
        %v134 = vrot.slane %v129, %v133
        %136 = vst [vmem:[%s128] sm:$0xff] %v134
        %s137 = sand.u32 %s64, 1
        %s138 = scalar_lea.sflag [#allocation4], %s137
        %s139 = sand.u32 %s64, 1
        %s140 = smul.addr %s139, 8
        %s141 = scalar_lea.vmem [#allocation5], %s140
        // Predicated region
        $region29: #{tpu_custom_call.1} parent=23 // pred_check
          %p142 = pneg %p74
        $region30: #{tpu_custom_call.1} parent=23 // pred_check_branch
          %144 = sbr.rel (%p142) target = $region32
        $region31: #{tpu_custom_call.1} parent=23 // pred_region
          %s146 = ssub.s32 128, 128
          %147 = vsyncadd %s138, %s146
          %s148 = sadd.s32 %s21, %s20
          %s149 = smul.addr %s148, 128
          %s150 = scalar_lea.hbm %s1, %s149
          %s152 = sshll.u32 %s141, 4
          %s153 = int_to_ptr.vmem [resolvable:$true] %s152
          %155 = dma.vmem_to_hbm [thread:$0]  %s153, 128, %s150, %s138
        $region32: #{tpu_custom_call.1} parent=23 // pred_fallthru
          _
      $region24: #{tpu_custom_call.1} parent=5 // pred_fallthru
        _
      %p156 = scmp.le.s32.totalorder 2, %s11
      // Predicated region
      $region33: #{tpu_custom_call.1} parent=5 // pred_check
        %p157 = pneg %p156
      $region34: #{tpu_custom_call.1} parent=5 // pred_check_branch
        %159 = sbr.rel (%p157) target = $region36
      $region35: #{tpu_custom_call.1} parent=5 // pred_region
        %s160 = ssub.s32 %s11, 2
        // Predicated region
        $region37: #{tpu_custom_call.1} parent=35 // pred_check
          %p161 = pneg %p80
        $region38: #{tpu_custom_call.1} parent=35 // pred_check_branch
          %163 = sbr.rel (%p161) target = $region40
        $region39: #{tpu_custom_call.1} parent=35 // pred_region
          %s164 = sand.u32 %s65, 1
          %s165 = scalar_lea.sflag [#allocation4], %s164
          %s166 = sand.u32 %s65, 1
          %s167 = smul.addr %s166, 8
          %s168 = scalar_lea.vmem [#allocation5], %s167
          %169 = dma.done %s165, 128
        $region40: #{tpu_custom_call.1} parent=35 // pred_fallthru
          _
      $region36: #{tpu_custom_call.1} parent=5 // pred_fallthru
        _
    $region6: #{tpu_custom_call.1} parent=1 // loop_footer
      %s15 = sadd.s32 1, %s11
    $region7: #{tpu_custom_call.1} parent=1 // loop_footer_branch
      %10 = sbr.rel target = $region3
    $region8: #{tpu_custom_call.1} parent=1 // loop_exit
      _
    %170 = vsyncpa [#allocation3], 1
    %s171 = scalar_lea.sflag [#allocation3], 1
    %172 = vsyncpa %s171, 1
    %173 = vsyncpa [#allocation4], 1
    %s174 = scalar_lea.sflag [#allocation4], 1
    %175 = vsyncpa %s174, 1

</llo_original>
